<compile_context>
chip_gen: v7x
topology: tpu7x:2x2x1
jax: 0.10.0
libtpu: 0.0.40
codegen_flags: <defaults>
</compile_context>

<pallas_src>
import functools

import jax
import jax.numpy as jnp
from jax import lax
from jax.experimental import pallas as pl
from jax.experimental.pallas import tpu as pltpu

_HIGHEST = lax.Precision.HIGHEST


def _round_up(x, m):
    return ((x + m - 1) // m) * m


def _vmem_budgets():
    """(scoped vmem_limit_bytes, per-call tile working-set budget) per TPU gen."""
    cap = 64 * 1024 * 1024                      # conservative default: v7x physical VMEM
    try:                                        # v5e / v6e report 128 MiB
        info_fn = getattr(pltpu, "get_tpu_info", None)
        if info_fn is not None:
            reported = int(getattr(info_fn(), "vmem_capacity_bytes", 0) or 0)
            if reported >= 32 * 1024 * 1024:
                cap = reported
    except Exception:
        pass
    return (3 * cap) // 4, cap // 2


def _auto_batch_block(b, c):
    # Pack several batch elements per grid step when C is small so the
    # (bb*C)-wide Gram matmul actually fills the MXU, but keep >= 2 batch grid
    # steps when possible so both v7x TensorCores get work on the parallel axis.
    best = 1
    for bb in range(1, b + 1):
        if b % bb != 0:
            continue
        if bb * c > 256:
            break
        if bb == 1 or b // bb >= 2:
            best = bb
    return best


def _auto_tile_n(n, c, bb, itemsize, budget_bytes):
    # Pass-2 working set: double-buffered (bb, C, TN) input + output tiles plus
    # the small attention block.
    n128 = _round_up(n, 128)
    fixed = 16 * bb * c * c
    per_col = 4 * bb * c * itemsize             # 2 bufs x (x-in + out), per column
    cap = max(128, (budget_bytes - fixed) // per_col)
    tn = max(128, (cap // 128) * 128)
    return min(tn, n128)


# ----------------------------------------------------------------------------
# In-kernel helpers
# ----------------------------------------------------------------------------

def _group_energy_f32(x, *, flat):
    """Per-group Gram: energy[g] = x[g] @ x[g].T in f32, x is a (bb, C, T) tile.

    When `flat` is set the tile is flattened to (bb*C, T) and a single MXU-wide
    Gram is computed (caller extracts the bb diagonal (C, C) blocks)."""
    bb, c, _ = x.shape
    if flat:
        xf = x.reshape(bb * c, x.shape[-1])
        return lax.dot_general(xf, xf, (((1,), (1,)), ((), ())),
                               preferred_element_type=jnp.float32,
                               precision=_HIGHEST)
    return lax.dot_general(x, x, (((2,), (2,)), ((0,), (0,))),
                           preferred_element_type=jnp.float32,
                           precision=_HIGHEST)


def _extract_diag_blocks(big, bb, c):
    return jnp.stack(
        [big[g * c:(g + 1) * c, g * c:(g + 1) * c] for g in range(bb)], axis=0)


def _cam_softmax(e):
    # softmax(rowmax(E) - E) == exp(rowmin(E) - E) / rowsum(...): shift-invariant,
    # and rowmin is the stabiliser that makes the largest exponent exactly 0.
    e_min = jnp.min(e, axis=-1, keepdims=True)
    p = jnp.exp(e_min - e)
    return p / jnp.sum(p, axis=-1, keepdims=True)


# ----------------------------------------------------------------------------
# Kernels
# ----------------------------------------------------------------------------

def _cam_fused_kernel(gamma_ref, x_ref, o_ref, *, flat):
    """Whole batch group resident: energy + softmax + attn @ x + residual."""
    x = x_ref[...]                                            # (bb, C, Np) native dtype
    bb, c, _ = x.shape
    e = _group_energy_f32(x, flat=flat)
    if flat:
        e = _extract_diag_blocks(e, bb, c)                    # (bb, C, C) f32
    attn = _cam_softmax(e).astype(x.dtype)                    # (bb, C, C)
    out = lax.dot_general(attn, x, (((2,), (1,)), ((0,), (0,))),
                          preferred_element_type=jnp.float32,
                          precision=_HIGHEST)                 # (bb, C, Np) f32
    o_ref[...] = (gamma_ref[0] * out + x.astype(jnp.float32)).astype(o_ref.dtype)


def _cam_energy_kernel(x_ref, attn_ref, acc_ref, *, flat):
    """Streaming pass 1: accumulate energy over spatial tiles, finish with softmax."""
    n = pl.program_id(1)
    bb, c, _ = attn_ref.shape

    @pl.when(n == 0)
    def _():
        acc_ref[...] = jnp.zeros_like(acc_ref)

    acc_ref[...] += _group_energy_f32(x_ref[...], flat=flat)

    @pl.when(n == pl.num_programs(1) - 1)
    def _():
        e = acc_ref[...]
        if flat:
            e = _extract_diag_blocks(e, bb, c)
        attn_ref[...] = _cam_softmax(e).astype(attn_ref.dtype)


def _cam_apply_kernel(gamma_ref, attn_ref, x_ref, o_ref):
    """Streaming pass 2: out_tile = gamma * (attn @ x_tile) + x_tile."""
    x = x_ref[...]                                            # (bb, C, TN)
    attn = attn_ref[...].astype(x.dtype)                      # (bb, C, C)
    out = lax.dot_general(attn, x, (((2,), (1,)), ((0,), (0,))),
                          preferred_element_type=jnp.float32,
                          precision=_HIGHEST)
    o_ref[...] = (gamma_ref[0] * out + x.astype(jnp.float32)).astype(o_ref.dtype)


# ----------------------------------------------------------------------------
# Wrapper
# ----------------------------------------------------------------------------

def cam_module_forward(x, gamma, *, tile_n=None, batch_block=None, fuse=None):
    """x: (B, C, H, W), gamma: (1,) -> (B, C, H, W). Matches CAM_Module.forward."""
    B, C, H, W = x.shape
    N = H * W
    itemsize = jnp.dtype(x.dtype).itemsize
    vmem_limit, tile_budget = _vmem_budgets()

    bb = batch_block if batch_block is not None else _auto_batch_block(B, C)
    assert B % bb == 0, "batch_block must divide the batch size"
    b_steps = B // bb
    flat = bb > 1 and bb * C <= 512               # flatten small-C Grams for the MXU

    gamma = jnp.asarray(gamma, jnp.float32).reshape((1,))
    x3 = x.reshape(B, C, N)
    n128 = _round_up(N, 128)

    # --- decide fused vs. streaming --------------------------------------
    slab_io = bb * C * n128 * itemsize
    slab_f32 = 4 * bb * C * n128
    fused_bytes = (4 * slab_io                               # double-buffered in + out
                   + (1 if itemsize >= 4 else 2) * slab_f32  # f32 intermediates
                   + 16 * bb * C * C
                   + (4 * (bb * C) ** 2 if flat else 0))
    use_fused = (fused_bytes <= tile_budget) if fuse is None else fuse

    if use_fused:
        # Single pass: x read once, written once; attn never touches HBM.
        n_pad = n128
        if n_pad != N:
            # Zero padding leaves energy = X X^T unchanged; padded output
            # columns are sliced off below.
            x3 = jnp.pad(x3, ((0, 0), (0, 0), (0, n_pad - N)))
        out3 = pl.pallas_call(
            functools.partial(_cam_fused_kernel, flat=flat),
            out_shape=jax.ShapeDtypeStruct((B, C, n_pad), x.dtype),
            grid=(b_steps,),
            in_specs=[
                pl.BlockSpec(memory_space=pltpu.SMEM),                  # gamma
                pl.BlockSpec((bb, C, n_pad), lambda b: (b, 0, 0)),
            ],
            out_specs=pl.BlockSpec((bb, C, n_pad), lambda b: (b, 0, 0)),
            compiler_params=pltpu.CompilerParams(
                dimension_semantics=("parallel",),
                vmem_limit_bytes=vmem_limit),
        )(gamma, x3)
    else:
        # Streaming two-pass fallback for slabs that do not fit VMEM.
        # (Further v7x-only option from the review -- an extra parallel grid
        #  axis over energy-row blocks when b_steps < 2 -- not applied here.)
        if tile_n is not None:
            tn2 = min(max(128, (tile_n // 128) * 128), n128)
            tn1 = tn2
        else:
            tn2 = _auto_tile_n(N, C, bb, itemsize, tile_budget)
            tn1 = tn2
        n_pad = _round_up(N, tn2)
        n_steps2 = n_pad // tn2
        if tile_n is None and n_steps2 % 2 == 0:
            # Pass 1 only streams the input (its output block is tiny and
            # revisited), so its working set is ~half of pass 2's: use a 2x
            # larger tile -> half the grid steps.
            tn1 = 2 * tn2
        n_steps1 = n_pad // tn1

        if n_pad != N:
            x3 = jnp.pad(x3, ((0, 0), (0, 0), (0, n_pad - N)))

        acc_shape = (bb * C, bb * C) if flat else (bb, C, C)

        # Pass 1: channel attention weights (B, C, C), kept in f32.
        attn = pl.pallas_call(
            functools.partial(_cam_energy_kernel, flat=flat),
            out_shape=jax.ShapeDtypeStruct((B, C, C), jnp.float32),
            grid=(b_steps, n_steps1),
            in_specs=[pl.BlockSpec((bb, C, tn1), lambda b, n: (b, 0, n))],
            out_specs=pl.BlockSpec((bb, C, C), lambda b, n: (b, 0, 0)),
            scratch_shapes=[pltpu.VMEM(acc_shape, jnp.float32)],
            compiler_params=pltpu.CompilerParams(
                dimension_semantics=("parallel", "arbitrary"),
                vmem_limit_bytes=vmem_limit),
        )(x3)

        # Pass 2: out = gamma * (attn @ x) + x, streamed over lane-dense tiles.
        out3 = pl.pallas_call(
            _cam_apply_kernel,
            out_shape=jax.ShapeDtypeStruct((B, C, n_pad), x.dtype),
            grid=(b_steps, n_steps2),
            in_specs=[
                pl.BlockSpec(memory_space=pltpu.SMEM),                  # gamma
                pl.BlockSpec((bb, C, C), lambda b, n: (b, 0, 0)),
                pl.BlockSpec((bb, C, tn2), lambda b, n: (b, 0, n)),
            ],
            out_specs=pl.BlockSpec((bb, C, tn2), lambda b, n: (b, 0, n)),
            compiler_params=pltpu.CompilerParams(
                dimension_semantics=("parallel", "parallel"),
                vmem_limit_bytes=vmem_limit),
        )(gamma, attn, x3)

    if n_pad != N:
        out3 = out3[:, :, :N]
    return out3.reshape(B, C, H, W)


def cam_module_reference(x, gamma):
    """Pure-JAX reference mirroring the PyTorch forward (full-precision matmuls)."""
    B, C, H, W = x.shape
    q = x.reshape(B, C, -1)                                   # (B, C, N)
    k = jnp.transpose(q, (0, 2, 1))                           # (B, N, C)
    energy = jnp.einsum('bcn,bnd->bcd', q, k, precision=_HIGHEST)
    energy_new = jnp.max(energy, axis=-1, keepdims=True) - energy
    attn = jax.nn.softmax(energy_new, axis=-1)
    out = jnp.einsum('bcd,bdn->bcn', attn, q,
                     precision=_HIGHEST).reshape(B, C, H, W)
    return gamma[0] * out + x


if __name__ == "__main__":
    root = jax.random.PRNGKey(0)
    k0, k1 = jax.random.split(root)

    # Main case: B=2, C=16, 16x16 -> N=256 (fused single-pass path, bb=1).
    B, C, H, W = 2, 16, 16, 16
    x = 0.25 * jax.random.normal(k0, (B, C, H, W), dtype=jnp.float32)

    # Parameter init exactly as in the module: gamma = zeros(1).
    gamma0 = jnp.zeros((1,), dtype=jnp.float32)
    out0 = jax.block_until_ready(cam_module_forward(x, gamma0))
    ref0 = cam_module_reference(x, gamma0)
    assert out0.shape == (B, C, H, W)
    assert jnp.allclose(out0, ref0, atol=1e-5, rtol=1e-5)

    # Non-zero gamma exercises the attention path.
    gamma1 = jnp.array([0.5], dtype=jnp.float32)
    out1 = jax.block_until_ready(cam_module_forward(x, gamma1))
    ref1 = cam_module_reference(x, gamma1)
    assert jnp.allclose(out1, ref1, atol=2e-3, rtol=2e-3)

    # Ragged spatial size (N=144 -> padded to 256) with two batch elements per
    # grid step: exercises the flattened small-C Gram in the fused kernel.
    x2 = 0.25 * jax.random.normal(k1, (4, 8, 12, 12), dtype=jnp.float32)
    gamma2 = jnp.array([0.25], dtype=jnp.float32)
    out2 = jax.block_until_ready(cam_module_forward(x2, gamma2, batch_block=2))
    ref2 = cam_module_reference(x2, gamma2)
    assert out2.shape == x2.shape
    assert jnp.allclose(out2, ref2, atol=2e-3, rtol=2e-3)

    # Same inputs through the streaming two-pass fallback (energy accumulated
    # over two 128-column tiles, then the tiled apply pass).
    out3 = jax.block_until_ready(
        cam_module_forward(x2, gamma2, tile_n=128, batch_block=2, fuse=False))
    assert jnp.allclose(out3, ref2, atol=2e-3, rtol=2e-3)

    print("KERNEL_OK")
</pallas_src>

<mosaic_0001>
module attributes {stable_mosaic.version = 11 : i64} {
  func.func @_cam_fused_kernel(%arg0: i32, %arg1: memref<1xf32, #tpu.memory_space<smem>>, %arg2: memref<1x16x256xf32, #tpu.memory_space<vmem>>, %arg3: memref<1x16x256xf32, #tpu.memory_space<vmem>>) attributes {dimension_semantics = [#tpu.dimension_semantics<parallel>], iteration_bounds = array<i64: 2>, scalar_prefetch = 0 : i64, scratch_operands = 0 : i64, tpu.core_type = #tpu.core_type<tc>, window_params = [{transform_indices = @transform_0, window_bounds = array<i64: 1>}, {transform_indices = @transform_1, window_bounds = array<i64: 1, 16, 256>}, {transform_indices = @transform_2, window_bounds = array<i64: 1, 16, 256>}]} {
    %c0 = arith.constant 0 : index
    %c0_0 = arith.constant 0 : index
    %c0_1 = arith.constant 0 : index
    %0 = vector.load %arg2[%c0, %c0_0, %c0_1] : memref<1x16x256xf32, #tpu.memory_space<vmem>>, vector<1x16x256xf32>
    %cst = arith.constant dense<0.000000e+00> : vector<1x16x16xf32>
    %1 = tpu.matmul %0, %0, %cst {dimension_numbers = #tpu.dot_dimension_numbers<[2], [2], [1], [1], [0, 0, 0, 1, 1, 1], [0], [0]>, precision = #tpu.contract_precision<fp32>} : vector<1x16x256xf32>, vector<1x16x256xf32>, vector<1x16x16xf32> -> vector<1x16x16xf32>
    %cst_2 = arith.constant dense<0x7F800000> : vector<1x16xf32>
    %2 = vector.multi_reduction <minimumf>, %1, %cst_2 [2] : vector<1x16x16xf32> to vector<1x16xf32>
    %3 = vector.shape_cast %2 : vector<1x16xf32> to vector<1x16x1xf32>
    %4 = vector.broadcast %3 : vector<1x16x1xf32> to vector<1x16x16xf32>
    %5 = arith.subf %4, %1 : vector<1x16x16xf32>
    %6 = math.exp %5 : vector<1x16x16xf32>
    %cst_3 = arith.constant dense<0.000000e+00> : vector<1x16xf32>
    %7 = vector.multi_reduction <add>, %6, %cst_3 [2] : vector<1x16x16xf32> to vector<1x16xf32>
    %8 = vector.shape_cast %7 : vector<1x16xf32> to vector<1x16x1xf32>
    %9 = vector.broadcast %8 : vector<1x16x1xf32> to vector<1x16x16xf32>
    %10 = arith.divf %6, %9 : vector<1x16x16xf32>
    %cst_4 = arith.constant dense<0.000000e+00> : vector<1x16x256xf32>
    %11 = tpu.matmul %10, %0, %cst_4 {dimension_numbers = #tpu.dot_dimension_numbers<[2], [1], [1], [2], [0, 0, 0, 1, 1, 2], [0], [0]>, precision = #tpu.contract_precision<fp32>} : vector<1x16x16xf32>, vector<1x16x256xf32>, vector<1x16x256xf32> -> vector<1x16x256xf32>
    %c0_5 = arith.constant 0 : index
    %12 = memref.load %arg1[%c0_5] : memref<1xf32, #tpu.memory_space<smem>>
    %13 = vector.broadcast %12 : f32 to vector<1x16x256xf32>
    %14 = arith.mulf %13, %11 : vector<1x16x256xf32>
    %15 = arith.addf %14, %0 : vector<1x16x256xf32>
    %c0_6 = arith.constant 0 : index
    %c0_7 = arith.constant 0 : index
    %c0_8 = arith.constant 0 : index
    %16 = vector.load %arg3[%c0_6, %c0_7, %c0_8] : memref<1x16x256xf32, #tpu.memory_space<vmem>>, vector<1x16x256xf32>
    tpu.vector_store %arg3[%c0_6, %c0_7, %c0_8], %15 {strides = array<i32>} : memref<1x16x256xf32, #tpu.memory_space<vmem>>, vector<1x16x256xf32>,
    return
  }
  func.func @transform_0(%arg0: i32) -> i32 {
    %c0_i32 = arith.constant 0 : i32
    %c0_i32_0 = arith.constant 0 : i32
    return %c0_i32 : i32
  }
  func.func @transform_1(%arg0: i32) -> (i32, i32, i32) {
    %c0_i32 = arith.constant 0 : i32
    %c0_i32_0 = arith.constant 0 : i32
    %c0_i32_1 = arith.constant 0 : i32
    return %arg0, %c0_i32, %c0_i32_0 : i32, i32, i32
  }
  func.func @transform_2(%arg0: i32) -> (i32, i32, i32) {
    %c0_i32 = arith.constant 0 : i32
    %c0_i32_0 = arith.constant 0 : i32
    %c0_i32_1 = arith.constant 0 : i32
    return %arg0, %c0_i32, %c0_i32_0 : i32, i32, i32
  }
}

</mosaic_0001>

<llo_original>
// kernel: tpu_custom_call.1
$region0: #{tpu_custom_call.1}
  #allocation0 [shape = 'u32[]', space=smem, size = 0x4, offset = 0x4, fixed_abs, tag = 'smem constant byte address 0x4 - core index']
  #allocation1 [shape = 'u32[144,128]{1,0:T(1,128)}', space=vmem, size = 0x12000, scoped, tag = 'internal scratch']
  #allocation2 [shape = 'f32[1]{0:T(128)S(6)}', space=smem, size = 0x200, scoped, tag = 'scoped memory for tpu_custom_call.1']
  %s0 = inlined_call_operand.<no memory space> [shape: f32[1], index: 0, kind: input, shape index: {}]
  %s1 = inlined_call_operand.hbm [shape: f32[2,16,256], index: 1, kind: input, shape index: {}]
  %s2 = inlined_call_operand.hbm [shape: f32[2,16,256], index: 2, kind: output, shape index: {}]
  %s3 = sld [smem:[#allocation0]]
  $region45: #{tpu_custom_call.1} parent=0
    _
  %s5 = ssub.s32 1, %s3
  %s6 = scalar_select 0, %s5, %s3
  %7 = sst [smem:[#allocation2]] %s0
  $region1: #{tpu_custom_call.1} parent=0
    #allocation3 [shape = 'u8[32768]{0}', space=vmem, size = 0x8000, scoped, tag = 'input window, operand 1']
    #allocation4 [shape = 's32[2]{0}', space=sflag, size = 0x8, scoped, tag = 'scoped memory for tpu_custom_call.1']
    #allocation5 [shape = 's32[2]{0}', space=sflag, size = 0x8, scoped, tag = 'scoped memory for tpu_custom_call.1']
    #allocation6 [shape = 'u8[32768]{0}', space=vmem, size = 0x8000, scoped, tag = 'output window, operand 0']
    %8 = vsyncpa [#allocation4], 0
    %s9 = scalar_lea.sflag [#allocation4], 1
    %10 = vsyncpa %s9, 0
    %11 = vsyncpa [#allocation5], 0
    %s12 = scalar_lea.sflag [#allocation5], 1
    %13 = vsyncpa %s12, 0
    loop: start=0, step=1, limit=4
    $region2: #{tpu_custom_call.1} parent=1 // loop_pre_header
      _
    $region3: #{tpu_custom_call.1} parent=1 // loop_header
      %s15 = sphi 0, %s19
      %p16 = scmp.ge.s32.totalorder %s15, 4
      %s23 = sphi 0, %s23
      %s25 = sphi 0, %s23
      %s26 = sphi 0, %s25
      %s40 = sphi 0, %s26
      %s46 = sphi 0, %s48
      %s49 = sphi 0, %s46
      %s50 = sphi 0, %s49
      %s66 = sphi 0, %s50
      %s72 = sphi 0, %s74
      %s75 = sphi 0, %s72
      %s76 = sphi 0, %s75
      %s92 = sphi 0, %s76
    $region4: #{tpu_custom_call.1} parent=1 // loop_header_branch
      %18 = sbr.rel (%p16) target = $region8
    $region5: #{tpu_custom_call.1} parent=1 // loop_body
      %s20 = ssub.s32 %s15, 1
      %s21 = ssub.s32 %s15, 2
      %s22 = sadd.s32 %s15, 1
      %s24 = sadd.s32 %s23, 1
      %p27 = scmp.eq.s32.totalorder %s15, 1
      %p28 = scmp.ne.s32.totalorder %s23, %s25
      %p29 = scmp.eq.s32.totalorder %s15, 0
      %p30 = por %p28, %p29
      %p31 = scmp.ne.s32.totalorder %s23, %s25
      %p32 = scmp.eq.s32.totalorder %s20, 1
      %p33 = por %p31, %p32
      %p34 = scmp.ne.s32.totalorder %s25, %s26
      %p35 = scmp.eq.s32.totalorder %s20, 0
      %p36 = por %p34, %p35
      %p37 = scmp.ne.s32.totalorder %s25, %s26
      %p38 = scmp.eq.s32.totalorder %s21, 1
      %p39 = por %p37, %p38
      %p41 = scmp.ne.s32.totalorder %s26, %s40
      %p42 = scmp.eq.s32.totalorder %s21, 0
      %p43 = por %p41, %p42
      %s44 = ssub.s32 %s15, %s22
      %p45 = scmp.eq.s32.totalorder %s44, 0
      %s47 = sadd.s32 %s46, 1
      %s48 = scalar_select %p45, %s46, %s47
      %p51 = pneg %p45
      %p52 = scmp.eq.s32.totalorder %s15, 1
      %p53 = por %p51, %p52
      %p54 = scmp.ne.s32.totalorder %s46, %s49
      %p55 = scmp.eq.s32.totalorder %s15, 0
      %p56 = por %p54, %p55
      %p57 = scmp.ne.s32.totalorder %s46, %s49
      %p58 = scmp.eq.s32.totalorder %s20, 1
      %p59 = por %p57, %p58
      %p60 = scmp.ne.s32.totalorder %s49, %s50
      %p61 = scmp.eq.s32.totalorder %s20, 0
      %p62 = por %p60, %p61
      %p63 = scmp.ne.s32.totalorder %s49, %s50
      %p64 = scmp.eq.s32.totalorder %s21, 1
      %p65 = por %p63, %p64
      %p67 = scmp.ne.s32.totalorder %s50, %s66
      %p68 = scmp.eq.s32.totalorder %s21, 0
      %p69 = por %p67, %p68
      %s70 = ssub.s32 %s15, %s22
      %p71 = scmp.eq.s32.totalorder %s70, 0
      %s73 = sadd.s32 %s72, 1
      %s74 = scalar_select %p71, %s72, %s73
      %p77 = pneg %p71
      %p78 = scmp.eq.s32.totalorder %s15, 1
      %p79 = por %p77, %p78
      %p80 = scmp.ne.s32.totalorder %s72, %s75
      %p81 = scmp.eq.s32.totalorder %s15, 0
      %p82 = por %p80, %p81
      %p83 = scmp.ne.s32.totalorder %s72, %s75
      %p84 = scmp.eq.s32.totalorder %s20, 1
      %p85 = por %p83, %p84
      %p86 = scmp.ne.s32.totalorder %s75, %s76
      %p87 = scmp.eq.s32.totalorder %s20, 0
      %p88 = por %p86, %p87
      %p89 = scmp.ne.s32.totalorder %s75, %s76
      %p90 = scmp.eq.s32.totalorder %s21, 1
      %p91 = por %p89, %p90
      %p93 = scmp.ne.s32.totalorder %s76, %s92
      %p94 = scmp.eq.s32.totalorder %s21, 0
      %p95 = por %p93, %p94
      %p96 = scmp.le.s32.totalorder 1, %s15
      %p97 = scmp.lt.s32.totalorder %s15, 3
      %p98 = pnand %p96, %p97
      %p99 = pneg %p98
      // Predicated region
      $region9: #{tpu_custom_call.1} parent=5 // pred_check
        _
      $region10: #{tpu_custom_call.1} parent=5 // pred_check_branch
        %101 = sbr.rel (%p98) target = $region12
      $region11: #{tpu_custom_call.1} parent=5 // pred_region
        %s102 = ssub.s32 %s15, 1
        // Predicated region
        $region13: #{tpu_custom_call.1} parent=11 // pred_check
          %p103 = pneg %p36
        $region14: #{tpu_custom_call.1} parent=11 // pred_check_branch
          %105 = sbr.rel (%p103) target = $region16
        $region15: #{tpu_custom_call.1} parent=11 // pred_region
          _
        $region16: #{tpu_custom_call.1} parent=11 // pred_fallthru
          _
      $region12: #{tpu_custom_call.1} parent=5 // pred_fallthru
        _
      %p106 = scmp.lt.s32.totalorder %s15, 2
      // Predicated region
      $region17: #{tpu_custom_call.1} parent=5 // pred_check
        %p107 = pneg %p106
      $region18: #{tpu_custom_call.1} parent=5 // pred_check_branch
        %109 = sbr.rel (%p107) target = $region20
      $region19: #{tpu_custom_call.1} parent=5 // pred_region
        // Predicated region
        $region21: #{tpu_custom_call.1} parent=19 // pred_check
          %p110 = pneg %p56
        $region22: #{tpu_custom_call.1} parent=19 // pred_check_branch
          %112 = sbr.rel (%p110) target = $region24
        $region23: #{tpu_custom_call.1} parent=19 // pred_region
          %s113 = sand.u32 %s46, 1
          %s114 = scalar_lea.sflag [#allocation4], %s113
          %s115 = sand.u32 %s46, 1
          %s116 = smul.addr %s115, 32
          %s117 = scalar_lea.vmem [#allocation3], %s116
          %s119 = ssub.s32 512, 512
          %120 = vsyncadd %s114, %s119
          %s121 = smul.addr %s15, 4
          %s122 = smul.addr %s121, 128
          %s123 = scalar_lea.hbm %s1, %s122
          %s124 = sshll.u32 %s117, 4
          %s125 = int_to_ptr.vmem [resolvable:$true] %s124
          %130 = dma.hbm_to_vmem [thread:$0]  %s123, 512, %s125, %s114, 256, 256, 16
        $region24: #{tpu_custom_call.1} parent=19 // pred_fallthru
          _
      $region20: #{tpu_custom_call.1} parent=5 // pred_fallthru
        _
      %p131 = scmp.le.s32.totalorder 1, %s15
      %p132 = scmp.lt.s32.totalorder %s15, 3
      %p133 = pnand %p131, %p132
      %p134 = pneg %p133
      // Predicated region
      $region25: #{tpu_custom_call.1} parent=5 // pred_check
        _
      $region26: #{tpu_custom_call.1} parent=5 // pred_check_branch
        %136 = sbr.rel (%p133) target = $region28
      $region27: #{tpu_custom_call.1} parent=5 // pred_region
        %s137 = ssub.s32 %s15, 1
        %s138 = sand.u32 %s49, 1
        %s139 = scalar_lea.sflag [#allocation4], %s138
        %s140 = sand.u32 %s49, 1
        %s141 = smul.addr %s140, 32
        %s142 = scalar_lea.vmem [#allocation3], %s141
        // Predicated region
        $region29: #{tpu_custom_call.1} parent=27 // pred_check
          %p143 = pneg %p62
        $region30: #{tpu_custom_call.1} parent=27 // pred_check_branch
          %145 = sbr.rel (%p143) target = $region32
        $region31: #{tpu_custom_call.1} parent=27 // pred_region
          %146 = dma.done %s139, 512
        $region32: #{tpu_custom_call.1} parent=27 // pred_fallthru
          _
        %p147 = pneg %p36
        %p148 = pneg %p33
        %s149 = sand.u32 %s49, 1
        %s150 = scalar_lea.sflag [#allocation4], %s149
        %s151 = sand.u32 %s49, 1
        %s152 = smul.addr %s151, 32
        %s153 = scalar_lea.vmem [#allocation3], %s152
        %p154 = pneg %p62
        %p155 = pneg %p59
        %p156 = pneg %p88
        %p157 = pneg %p85
        %s158 = sand.u32 %s75, 1
        %s159 = scalar_lea.sflag [#allocation5], %s158
        %s160 = sand.u32 %s75, 1
        %s161 = smul.addr %s160, 32
        %s162 = scalar_lea.vmem [#allocation6], %s161
        %v163 = vld [vmem:[%s142] sm:$0xff]
        %v164 = vld [vmem:[%s142 + $0x8] sm:$0xff]
        %v165 = vld [vmem:[%s142 + $0x10] sm:$0xff]
        %v166 = vld [vmem:[%s142 + $0x18] sm:$0xff]
        %v167 = vand.u32 %v164, 4294901760
        %168 = vmatprep.subr.mxu0 %v167
        %v169 = vand.u32 %v163, 4294901760
        %170 = vmatpush1.xpose.msra.mxu0 %v169
        %v171 = vand.u32 %v166, 4294901760
        %172 = vmatprep.subr.mxu0 %v171
        %v173 = vand.u32 %v165, 4294901760
        %174 = vmatpush1.xpose.msra.mxu0 %v173
        %175 = vmatprep.subr.mxu0 0.0
        %176 = vmatpush1.xpose.msra.mxu0 0.0
        %177 = vmatprep.subr.mxu0 0.0
        %178 = vmatpush1.xpose.msra.mxu0 0.0
        %179 = vmatprep.subr.mxu0 0.0
        %180 = vmatpush1.xpose.msra.mxu0 0.0
        %181 = vmatprep.subr.mxu0 0.0
        %182 = vmatpush1.xpose.msra.mxu0 0.0
        %183 = vmatprep.subr.mxu0 0.0
        %184 = vmatpush1.xpose.msra.mxu0 0.0
        %185 = vmatprep.subr.mxu0 0.0
        %186 = vmatpush1.xpose.msra.mxu0 0.0
        %187 = vmatprep.subr.mxu0 0.0
        %188 = vmatpush1.xpose.msra.mxu0 0.0
        %189 = vmatprep.subr.mxu0 0.0
        %190 = vmatpush1.xpose.msra.mxu0 0.0
        %191 = vmatprep.subr.mxu0 0.0
        %192 = vmatpush1.xpose.msra.mxu0 0.0
        %193 = vmatprep.subr.mxu0 0.0
        %194 = vmatpush1.xpose.msra.mxu0 0.0
        %195 = vmatprep.subr.mxu0 0.0
        %196 = vmatpush1.xpose.msra.mxu0 0.0
        %197 = vmatprep.subr.mxu0 0.0
        %198 = vmatpush1.xpose.msra.mxu0 0.0
        %199 = vmatprep.subr.mxu0 0.0
        %200 = vmatpush1.xpose.msra.mxu0 0.0
        %201 = vmatprep.subr.mxu0 0.0
        %202 = vmatpush1.xpose.msra.mxu0 0.0
        %203 = vmatprep.subr.mxu0 0.0
        %204 = vmatpush1.xpose.msra.mxu0 0.0
        %205 = vmatprep.subr.mxu0 0.0
        %206 = vmatpush1.xpose.msra.mxu0 0.0
        %207 = vmatprep.subr.mxu0 0.0
        %208 = vmatpush1.xpose.msra.mxu0 0.0
        %209 = vmatprep.subr.mxu0 0.0
        %210 = vmatpush1.xpose.msra.mxu0 0.0
        %211 = vmatprep.subr.mxu0 0.0
        %212 = vmatpush1.xpose.msra.mxu0 0.0
        %213 = vmatprep.subr.mxu0 0.0
        %214 = vmatpush1.xpose.msra.mxu0 0.0
        %215 = vmatprep.subr.mxu0 0.0
        %216 = vmatpush1.xpose.msra.mxu0 0.0
        %217 = vmatprep.subr.mxu0 0.0
        %218 = vmatpush1.xpose.msra.mxu0 0.0
        %219 = vmatprep.subr.mxu0 0.0
        %220 = vmatpush1.xpose.msra.mxu0 0.0
        %221 = vmatprep.subr.mxu0 0.0
        %222 = vmatpush1.xpose.msra.mxu0 0.0
        %223 = vmatprep.subr.mxu0 0.0
        %224 = vmatpush1.xpose.msra.mxu0 0.0
        %225 = vmatprep.subr.mxu0 0.0
        %226 = vmatpush1.xpose.msra.mxu0 0.0
        %227 = vmatprep.subr.mxu0 0.0
        %228 = vmatpush1.xpose.msra.mxu0 0.0
        %229 = vmatprep.subr.mxu0 0.0
        %230 = vmatpush1.xpose.msra.mxu0 0.0
        %231 = vmatprep.subr.mxu0 0.0
        %232 = vmatpush1.xpose.msra.mxu0 0.0
        %233 = vmatprep.subr.mxu0 0.0
        %234 = vmatpush1.xpose.msra.mxu0 0.0
        %v235 = vand.u32 %v164, 4294901760
        %v236 = vsub.f32 %v164, %v235
        %v237 = vand.u32 %v236, 4294901760
        %v238 = vsub.f32 %v236, %v237
        %v239 = vand.u32 %v238, 4294901760
        %240 = vmatprep.mubr.f32.mxu0 %v239
        %v241 = vand.u32 %v163, 4294901760
        %v242 = vsub.f32 %v163, %v241
        %v243 = vand.u32 %v242, 4294901760
        %v244 = vsub.f32 %v242, %v243
        %v245 = vand.u32 %v244, 4294901760
        %246 = vmatmul.mubr.f32.gmra.mrb[0].mxu0 %v245
        %v247 = vpop.f32.mrb[0].mxu0
        %v248 = vadd.f32 0.0, %v247
        %v249 = vpop.f32.mrb[0].mxu0
        %v250 = vand.u32 %v166, 4294901760
        %v251 = vsub.f32 %v166, %v250
        %v252 = vand.u32 %v251, 4294901760
        %v253 = vsub.f32 %v251, %v252
        %v254 = vand.u32 %v253, 4294901760
        %255 = vmatprep.mubr.f32.mxu0 %v254
        %v256 = vand.u32 %v165, 4294901760
        %v257 = vsub.f32 %v165, %v256
        %v258 = vand.u32 %v257, 4294901760
        %v259 = vsub.f32 %v257, %v258
        %v260 = vand.u32 %v259, 4294901760
        %261 = vmatmul.mubr.f32.gmra.mrb[0].mxu0 %v260
        %v262 = vpop.f32.mrb[0].mxu0
        %v263 = vadd.f32 0.0, %v262
        %v264 = vpop.f32.mrb[0].mxu0
        %265 = vdwg.mxu0
        %v266 = vand.u32 %v164, 4294901760
        %v267 = vsub.f32 %v164, %v266
        %v268 = vand.u32 %v267, 4294901760
        %v269 = vsub.f32 %v267, %v268
        %v270 = vand.u32 %v269, 4294901760
        %271 = vmatprep.subr.mxu0 %v270
        %v272 = vand.u32 %v163, 4294901760
        %v273 = vsub.f32 %v163, %v272
        %v274 = vand.u32 %v273, 4294901760
        %v275 = vsub.f32 %v273, %v274
        %v276 = vand.u32 %v275, 4294901760
        %277 = vmatpush1.xpose.msra.mxu0 %v276
        %v278 = vand.u32 %v166, 4294901760
        %v279 = vsub.f32 %v166, %v278
        %v280 = vand.u32 %v279, 4294901760
        %v281 = vsub.f32 %v279, %v280
        %v282 = vand.u32 %v281, 4294901760
        %283 = vmatprep.subr.mxu0 %v282
        %v284 = vand.u32 %v165, 4294901760
        %v285 = vsub.f32 %v165, %v284
        %v286 = vand.u32 %v285, 4294901760
        %v287 = vsub.f32 %v285, %v286
        %v288 = vand.u32 %v287, 4294901760
        %289 = vmatpush1.xpose.msra.mxu0 %v288
        %290 = vmatprep.subr.mxu0 0.0
        %291 = vmatpush1.xpose.msra.mxu0 0.0
        %292 = vmatprep.subr.mxu0 0.0
        %293 = vmatpush1.xpose.msra.mxu0 0.0
        %294 = vmatprep.subr.mxu0 0.0
        %295 = vmatpush1.xpose.msra.mxu0 0.0
        %296 = vmatprep.subr.mxu0 0.0
        %297 = vmatpush1.xpose.msra.mxu0 0.0
        %298 = vmatprep.subr.mxu0 0.0
        %299 = vmatpush1.xpose.msra.mxu0 0.0
        %300 = vmatprep.subr.mxu0 0.0
        %301 = vmatpush1.xpose.msra.mxu0 0.0
        %302 = vmatprep.subr.mxu0 0.0
        %303 = vmatpush1.xpose.msra.mxu0 0.0
        %304 = vmatprep.subr.mxu0 0.0
        %305 = vmatpush1.xpose.msra.mxu0 0.0
        %306 = vmatprep.subr.mxu0 0.0
        %307 = vmatpush1.xpose.msra.mxu0 0.0
        %308 = vmatprep.subr.mxu0 0.0
        %309 = vmatpush1.xpose.msra.mxu0 0.0
        %310 = vmatprep.subr.mxu0 0.0
        %311 = vmatpush1.xpose.msra.mxu0 0.0
        %312 = vmatprep.subr.mxu0 0.0
        %313 = vmatpush1.xpose.msra.mxu0 0.0
        %314 = vmatprep.subr.mxu0 0.0
        %315 = vmatpush1.xpose.msra.mxu0 0.0
        %316 = vmatprep.subr.mxu0 0.0
        %317 = vmatpush1.xpose.msra.mxu0 0.0
        %318 = vmatprep.subr.mxu0 0.0
        %319 = vmatpush1.xpose.msra.mxu0 0.0
        %320 = vmatprep.subr.mxu0 0.0
        %321 = vmatpush1.xpose.msra.mxu0 0.0
        %322 = vmatprep.subr.mxu0 0.0
        %323 = vmatpush1.xpose.msra.mxu0 0.0
        %324 = vmatprep.subr.mxu0 0.0
        %325 = vmatpush1.xpose.msra.mxu0 0.0
        %326 = vmatprep.subr.mxu0 0.0
        %327 = vmatpush1.xpose.msra.mxu0 0.0
        %328 = vmatprep.subr.mxu0 0.0
        %329 = vmatpush1.xpose.msra.mxu0 0.0
        %330 = vmatprep.subr.mxu0 0.0
        %331 = vmatpush1.xpose.msra.mxu0 0.0
        %332 = vmatprep.subr.mxu0 0.0
        %333 = vmatpush1.xpose.msra.mxu0 0.0
        %334 = vmatprep.subr.mxu0 0.0
        %335 = vmatpush1.xpose.msra.mxu0 0.0
        %336 = vmatprep.subr.mxu0 0.0
        %337 = vmatpush1.xpose.msra.mxu0 0.0
        %338 = vmatprep.subr.mxu0 0.0
        %339 = vmatpush1.xpose.msra.mxu0 0.0
        %340 = vmatprep.subr.mxu0 0.0
        %341 = vmatpush1.xpose.msra.mxu0 0.0
        %342 = vmatprep.subr.mxu0 0.0
        %343 = vmatpush1.xpose.msra.mxu0 0.0
        %344 = vmatprep.subr.mxu0 0.0
        %345 = vmatpush1.xpose.msra.mxu0 0.0
        %346 = vmatprep.subr.mxu0 0.0
        %347 = vmatpush1.xpose.msra.mxu0 0.0
        %348 = vmatprep.subr.mxu0 0.0
        %349 = vmatpush1.xpose.msra.mxu0 0.0
        %v350 = vand.u32 %v164, 4294901760
        %351 = vmatprep.mubr.f32.mxu0 %v350
        %v352 = vand.u32 %v163, 4294901760
        %353 = vmatmul.mubr.f32.gmra.mrb[0].mxu0 %v352
        %v354 = vpop.f32.mrb[0].mxu0
        %v355 = vadd.f32 %v248, %v354
        %v356 = vpop.f32.mrb[0].mxu0
        %v357 = vand.u32 %v166, 4294901760
        %358 = vmatprep.mubr.f32.mxu0 %v357
        %v359 = vand.u32 %v165, 4294901760
        %360 = vmatmul.mubr.f32.gmra.mrb[0].mxu0 %v359
        %v361 = vpop.f32.mrb[0].mxu0
        %v362 = vadd.f32 %v263, %v361
        %v363 = vpop.f32.mrb[0].mxu0
        %364 = vdwg.mxu0
        %v365 = vand.u32 %v164, 4294901760
        %v366 = vsub.f32 %v164, %v365
        %367 = vmatprep.subr.mxu0 %v366
        %v368 = vand.u32 %v163, 4294901760
        %v369 = vsub.f32 %v163, %v368
        %370 = vmatpush1.xpose.msra.mxu0 %v369
        %v371 = vand.u32 %v166, 4294901760
        %v372 = vsub.f32 %v166, %v371
        %373 = vmatprep.subr.mxu0 %v372
        %v374 = vand.u32 %v165, 4294901760
        %v375 = vsub.f32 %v165, %v374
        %376 = vmatpush1.xpose.msra.mxu0 %v375
        %377 = vmatprep.subr.mxu0 0.0
        %378 = vmatpush1.xpose.msra.mxu0 0.0
        %379 = vmatprep.subr.mxu0 0.0
        %380 = vmatpush1.xpose.msra.mxu0 0.0
        %381 = vmatprep.subr.mxu0 0.0
        %382 = vmatpush1.xpose.msra.mxu0 0.0
        %383 = vmatprep.subr.mxu0 0.0
        %384 = vmatpush1.xpose.msra.mxu0 0.0
        %385 = vmatprep.subr.mxu0 0.0
        %386 = vmatpush1.xpose.msra.mxu0 0.0
        %387 = vmatprep.subr.mxu0 0.0
        %388 = vmatpush1.xpose.msra.mxu0 0.0
        %389 = vmatprep.subr.mxu0 0.0
        %390 = vmatpush1.xpose.msra.mxu0 0.0
        %391 = vmatprep.subr.mxu0 0.0
        %392 = vmatpush1.xpose.msra.mxu0 0.0
        %393 = vmatprep.subr.mxu0 0.0
        %394 = vmatpush1.xpose.msra.mxu0 0.0
        %395 = vmatprep.subr.mxu0 0.0
        %396 = vmatpush1.xpose.msra.mxu0 0.0
        %397 = vmatprep.subr.mxu0 0.0
        %398 = vmatpush1.xpose.msra.mxu0 0.0
        %399 = vmatprep.subr.mxu0 0.0
        %400 = vmatpush1.xpose.msra.mxu0 0.0
        %401 = vmatprep.subr.mxu0 0.0
        %402 = vmatpush1.xpose.msra.mxu0 0.0
        %403 = vmatprep.subr.mxu0 0.0
        %404 = vmatpush1.xpose.msra.mxu0 0.0
        %405 = vmatprep.subr.mxu0 0.0
        %406 = vmatpush1.xpose.msra.mxu0 0.0
        %407 = vmatprep.subr.mxu0 0.0
        %408 = vmatpush1.xpose.msra.mxu0 0.0
        %409 = vmatprep.subr.mxu0 0.0
        %410 = vmatpush1.xpose.msra.mxu0 0.0
        %411 = vmatprep.subr.mxu0 0.0
        %412 = vmatpush1.xpose.msra.mxu0 0.0
        %413 = vmatprep.subr.mxu0 0.0
        %414 = vmatpush1.xpose.msra.mxu0 0.0
        %415 = vmatprep.subr.mxu0 0.0
        %416 = vmatpush1.xpose.msra.mxu0 0.0
        %417 = vmatprep.subr.mxu0 0.0
        %418 = vmatpush1.xpose.msra.mxu0 0.0
        %419 = vmatprep.subr.mxu0 0.0
        %420 = vmatpush1.xpose.msra.mxu0 0.0
        %421 = vmatprep.subr.mxu0 0.0
        %422 = vmatpush1.xpose.msra.mxu0 0.0
        %423 = vmatprep.subr.mxu0 0.0
        %424 = vmatpush1.xpose.msra.mxu0 0.0
        %425 = vmatprep.subr.mxu0 0.0
        %426 = vmatpush1.xpose.msra.mxu0 0.0
        %427 = vmatprep.subr.mxu0 0.0
        %428 = vmatpush1.xpose.msra.mxu0 0.0
        %429 = vmatprep.subr.mxu0 0.0
        %430 = vmatpush1.xpose.msra.mxu0 0.0
        %431 = vmatprep.subr.mxu0 0.0
        %432 = vmatpush1.xpose.msra.mxu0 0.0
        %433 = vmatprep.subr.mxu0 0.0
        %434 = vmatpush1.xpose.msra.mxu0 0.0
        %435 = vmatprep.subr.mxu0 0.0
        %436 = vmatpush1.xpose.msra.mxu0 0.0
        %v437 = vand.u32 %v164, 4294901760
        %v438 = vsub.f32 %v164, %v437
        %439 = vmatprep.mubr.f32.mxu0 %v438
        %v440 = vand.u32 %v163, 4294901760
        %v441 = vsub.f32 %v163, %v440
        %442 = vmatmul.mubr.f32.gmra.mrb[0].mxu0 %v441
        %v443 = vpop.f32.mrb[0].mxu0
        %v444 = vadd.f32 %v355, %v443
        %v445 = vpop.f32.mrb[0].mxu0
        %v446 = vand.u32 %v166, 4294901760
        %v447 = vsub.f32 %v166, %v446
        %448 = vmatprep.mubr.f32.mxu0 %v447
        %v449 = vand.u32 %v165, 4294901760
        %v450 = vsub.f32 %v165, %v449
        %451 = vmatmul.mubr.f32.gmra.mrb[0].mxu0 %v450
        %v452 = vpop.f32.mrb[0].mxu0
        %v453 = vadd.f32 %v362, %v452
        %v454 = vpop.f32.mrb[0].mxu0
        %455 = vdwg.mxu0
        %v456 = vand.u32 %v164, 4294901760
        %457 = vmatprep.subr.mxu0 %v456
        %v458 = vand.u32 %v163, 4294901760
        %459 = vmatpush1.xpose.msra.mxu0 %v458
        %v460 = vand.u32 %v166, 4294901760
        %461 = vmatprep.subr.mxu0 %v460
        %v462 = vand.u32 %v165, 4294901760
        %463 = vmatpush1.xpose.msra.mxu0 %v462
        %464 = vmatprep.subr.mxu0 0.0
        %465 = vmatpush1.xpose.msra.mxu0 0.0
        %466 = vmatprep.subr.mxu0 0.0
        %467 = vmatpush1.xpose.msra.mxu0 0.0
        %468 = vmatprep.subr.mxu0 0.0
        %469 = vmatpush1.xpose.msra.mxu0 0.0
        %470 = vmatprep.subr.mxu0 0.0
        %471 = vmatpush1.xpose.msra.mxu0 0.0
        %472 = vmatprep.subr.mxu0 0.0
        %473 = vmatpush1.xpose.msra.mxu0 0.0
        %474 = vmatprep.subr.mxu0 0.0
        %475 = vmatpush1.xpose.msra.mxu0 0.0
        %476 = vmatprep.subr.mxu0 0.0
        %477 = vmatpush1.xpose.msra.mxu0 0.0
        %478 = vmatprep.subr.mxu0 0.0
        %479 = vmatpush1.xpose.msra.mxu0 0.0
        %480 = vmatprep.subr.mxu0 0.0
        %481 = vmatpush1.xpose.msra.mxu0 0.0
        %482 = vmatprep.subr.mxu0 0.0
        %483 = vmatpush1.xpose.msra.mxu0 0.0
        %484 = vmatprep.subr.mxu0 0.0
        %485 = vmatpush1.xpose.msra.mxu0 0.0
        %486 = vmatprep.subr.mxu0 0.0
        %487 = vmatpush1.xpose.msra.mxu0 0.0
        %488 = vmatprep.subr.mxu0 0.0
        %489 = vmatpush1.xpose.msra.mxu0 0.0
        %490 = vmatprep.subr.mxu0 0.0
        %491 = vmatpush1.xpose.msra.mxu0 0.0
        %492 = vmatprep.subr.mxu0 0.0
        %493 = vmatpush1.xpose.msra.mxu0 0.0
        %494 = vmatprep.subr.mxu0 0.0
        %495 = vmatpush1.xpose.msra.mxu0 0.0
        %496 = vmatprep.subr.mxu0 0.0
        %497 = vmatpush1.xpose.msra.mxu0 0.0
        %498 = vmatprep.subr.mxu0 0.0
        %499 = vmatpush1.xpose.msra.mxu0 0.0
        %500 = vmatprep.subr.mxu0 0.0
        %501 = vmatpush1.xpose.msra.mxu0 0.0
        %502 = vmatprep.subr.mxu0 0.0
        %503 = vmatpush1.xpose.msra.mxu0 0.0
        %504 = vmatprep.subr.mxu0 0.0
        %505 = vmatpush1.xpose.msra.mxu0 0.0
        %506 = vmatprep.subr.mxu0 0.0
        %507 = vmatpush1.xpose.msra.mxu0 0.0
        %508 = vmatprep.subr.mxu0 0.0
        %509 = vmatpush1.xpose.msra.mxu0 0.0
        %510 = vmatprep.subr.mxu0 0.0
        %511 = vmatpush1.xpose.msra.mxu0 0.0
        %512 = vmatprep.subr.mxu0 0.0
        %513 = vmatpush1.xpose.msra.mxu0 0.0
        %514 = vmatprep.subr.mxu0 0.0
        %515 = vmatpush1.xpose.msra.mxu0 0.0
        %516 = vmatprep.subr.mxu0 0.0
        %517 = vmatpush1.xpose.msra.mxu0 0.0
        %518 = vmatprep.subr.mxu0 0.0
        %519 = vmatpush1.xpose.msra.mxu0 0.0
        %520 = vmatprep.subr.mxu0 0.0
        %521 = vmatpush1.xpose.msra.mxu0 0.0
        %522 = vmatprep.subr.mxu0 0.0
        %523 = vmatpush1.xpose.msra.mxu0 0.0
        %v524 = vand.u32 %v164, 4294901760
        %v525 = vsub.f32 %v164, %v524
        %v526 = vand.u32 %v525, 4294901760
        %527 = vmatprep.mubr.f32.mxu0 %v526
        %v528 = vand.u32 %v163, 4294901760
        %v529 = vsub.f32 %v163, %v528
        %v530 = vand.u32 %v529, 4294901760
        %531 = vmatmul.mubr.f32.gmra.mrb[0].mxu0 %v530
        %v532 = vpop.f32.mrb[0].mxu0
        %v533 = vadd.f32 %v444, %v532
        %v534 = vpop.f32.mrb[0].mxu0
        %v535 = vand.u32 %v166, 4294901760
        %v536 = vsub.f32 %v166, %v535
        %v537 = vand.u32 %v536, 4294901760
        %538 = vmatprep.mubr.f32.mxu0 %v537
        %v539 = vand.u32 %v165, 4294901760
        %v540 = vsub.f32 %v165, %v539
        %v541 = vand.u32 %v540, 4294901760
        %542 = vmatmul.mubr.f32.gmra.mrb[0].mxu0 %v541
        %v543 = vpop.f32.mrb[0].mxu0
        %v544 = vadd.f32 %v453, %v543
        %v545 = vpop.f32.mrb[0].mxu0
        %546 = vdwg.mxu0
        %v547 = vand.u32 %v164, 4294901760
        %v548 = vsub.f32 %v164, %v547
        %v549 = vand.u32 %v548, 4294901760
        %550 = vmatprep.subr.mxu0 %v549
        %v551 = vand.u32 %v163, 4294901760
        %v552 = vsub.f32 %v163, %v551
        %v553 = vand.u32 %v552, 4294901760
        %554 = vmatpush1.xpose.msra.mxu0 %v553
        %v555 = vand.u32 %v166, 4294901760
        %v556 = vsub.f32 %v166, %v555
        %v557 = vand.u32 %v556, 4294901760
        %558 = vmatprep.subr.mxu0 %v557
        %v559 = vand.u32 %v165, 4294901760
        %v560 = vsub.f32 %v165, %v559
        %v561 = vand.u32 %v560, 4294901760
        %562 = vmatpush1.xpose.msra.mxu0 %v561
        %563 = vmatprep.subr.mxu0 0.0
        %564 = vmatpush1.xpose.msra.mxu0 0.0
        %565 = vmatprep.subr.mxu0 0.0
        %566 = vmatpush1.xpose.msra.mxu0 0.0
        %567 = vmatprep.subr.mxu0 0.0
        %568 = vmatpush1.xpose.msra.mxu0 0.0
        %569 = vmatprep.subr.mxu0 0.0
        %570 = vmatpush1.xpose.msra.mxu0 0.0
        %571 = vmatprep.subr.mxu0 0.0
        %572 = vmatpush1.xpose.msra.mxu0 0.0
        %573 = vmatprep.subr.mxu0 0.0
        %574 = vmatpush1.xpose.msra.mxu0 0.0
        %575 = vmatprep.subr.mxu0 0.0
        %576 = vmatpush1.xpose.msra.mxu0 0.0
        %577 = vmatprep.subr.mxu0 0.0
        %578 = vmatpush1.xpose.msra.mxu0 0.0
        %579 = vmatprep.subr.mxu0 0.0
        %580 = vmatpush1.xpose.msra.mxu0 0.0
        %581 = vmatprep.subr.mxu0 0.0
        %582 = vmatpush1.xpose.msra.mxu0 0.0
        %583 = vmatprep.subr.mxu0 0.0
        %584 = vmatpush1.xpose.msra.mxu0 0.0
        %585 = vmatprep.subr.mxu0 0.0
        %586 = vmatpush1.xpose.msra.mxu0 0.0
        %587 = vmatprep.subr.mxu0 0.0
        %588 = vmatpush1.xpose.msra.mxu0 0.0
        %589 = vmatprep.subr.mxu0 0.0
        %590 = vmatpush1.xpose.msra.mxu0 0.0
        %591 = vmatprep.subr.mxu0 0.0
        %592 = vmatpush1.xpose.msra.mxu0 0.0
        %593 = vmatprep.subr.mxu0 0.0
        %594 = vmatpush1.xpose.msra.mxu0 0.0
        %595 = vmatprep.subr.mxu0 0.0
        %596 = vmatpush1.xpose.msra.mxu0 0.0
        %597 = vmatprep.subr.mxu0 0.0
        %598 = vmatpush1.xpose.msra.mxu0 0.0
        %599 = vmatprep.subr.mxu0 0.0
        %600 = vmatpush1.xpose.msra.mxu0 0.0
        %601 = vmatprep.subr.mxu0 0.0
        %602 = vmatpush1.xpose.msra.mxu0 0.0
        %603 = vmatprep.subr.mxu0 0.0
        %604 = vmatpush1.xpose.msra.mxu0 0.0
        %605 = vmatprep.subr.mxu0 0.0
        %606 = vmatpush1.xpose.msra.mxu0 0.0
        %607 = vmatprep.subr.mxu0 0.0
        %608 = vmatpush1.xpose.msra.mxu0 0.0
        %609 = vmatprep.subr.mxu0 0.0
        %610 = vmatpush1.xpose.msra.mxu0 0.0
        %611 = vmatprep.subr.mxu0 0.0
        %612 = vmatpush1.xpose.msra.mxu0 0.0
        %613 = vmatprep.subr.mxu0 0.0
        %614 = vmatpush1.xpose.msra.mxu0 0.0
        %615 = vmatprep.subr.mxu0 0.0
        %616 = vmatpush1.xpose.msra.mxu0 0.0
        %617 = vmatprep.subr.mxu0 0.0
        %618 = vmatpush1.xpose.msra.mxu0 0.0
        %619 = vmatprep.subr.mxu0 0.0
        %620 = vmatpush1.xpose.msra.mxu0 0.0
        %621 = vmatprep.subr.mxu0 0.0
        %622 = vmatpush1.xpose.msra.mxu0 0.0
        %v623 = vand.u32 %v164, 4294901760
        %624 = vmatprep.mubr.f32.mxu0 %v623
        %v625 = vand.u32 %v163, 4294901760
        %626 = vmatmul.mubr.f32.gmra.mrb[0].mxu0 %v625
        %v627 = vpop.f32.mrb[0].mxu0
        %v628 = vadd.f32 %v533, %v627
        %v629 = vpop.f32.mrb[0].mxu0
        %v630 = vand.u32 %v166, 4294901760
        %631 = vmatprep.mubr.f32.mxu0 %v630
        %v632 = vand.u32 %v165, 4294901760
        %633 = vmatmul.mubr.f32.gmra.mrb[0].mxu0 %v632
        %v634 = vpop.f32.mrb[0].mxu0
        %v635 = vadd.f32 %v544, %v634
        %v636 = vpop.f32.mrb[0].mxu0
        %637 = vdwg.mxu0
        %v638 = vand.u32 %v164, 4294901760
        %639 = vmatprep.subr.mxu0 %v638
        %v640 = vand.u32 %v163, 4294901760
        %641 = vmatpush1.xpose.msra.mxu0 %v640
        %v642 = vand.u32 %v166, 4294901760
        %643 = vmatprep.subr.mxu0 %v642
        %v644 = vand.u32 %v165, 4294901760
        %645 = vmatpush1.xpose.msra.mxu0 %v644
        %646 = vmatprep.subr.mxu0 0.0
        %647 = vmatpush1.xpose.msra.mxu0 0.0
        %648 = vmatprep.subr.mxu0 0.0
        %649 = vmatpush1.xpose.msra.mxu0 0.0
        %650 = vmatprep.subr.mxu0 0.0
        %651 = vmatpush1.xpose.msra.mxu0 0.0
        %652 = vmatprep.subr.mxu0 0.0
        %653 = vmatpush1.xpose.msra.mxu0 0.0
        %654 = vmatprep.subr.mxu0 0.0
        %655 = vmatpush1.xpose.msra.mxu0 0.0
        %656 = vmatprep.subr.mxu0 0.0
        %657 = vmatpush1.xpose.msra.mxu0 0.0
        %658 = vmatprep.subr.mxu0 0.0
        %659 = vmatpush1.xpose.msra.mxu0 0.0
        %660 = vmatprep.subr.mxu0 0.0
        %661 = vmatpush1.xpose.msra.mxu0 0.0
        %662 = vmatprep.subr.mxu0 0.0
        %663 = vmatpush1.xpose.msra.mxu0 0.0
        %664 = vmatprep.subr.mxu0 0.0
        %665 = vmatpush1.xpose.msra.mxu0 0.0
        %666 = vmatprep.subr.mxu0 0.0
        %667 = vmatpush1.xpose.msra.mxu0 0.0
        %668 = vmatprep.subr.mxu0 0.0
        %669 = vmatpush1.xpose.msra.mxu0 0.0
        %670 = vmatprep.subr.mxu0 0.0
        %671 = vmatpush1.xpose.msra.mxu0 0.0
        %672 = vmatprep.subr.mxu0 0.0
        %673 = vmatpush1.xpose.msra.mxu0 0.0
        %674 = vmatprep.subr.mxu0 0.0
        %675 = vmatpush1.xpose.msra.mxu0 0.0
        %676 = vmatprep.subr.mxu0 0.0
        %677 = vmatpush1.xpose.msra.mxu0 0.0
        %678 = vmatprep.subr.mxu0 0.0
        %679 = vmatpush1.xpose.msra.mxu0 0.0
        %680 = vmatprep.subr.mxu0 0.0
        %681 = vmatpush1.xpose.msra.mxu0 0.0
        %682 = vmatprep.subr.mxu0 0.0
        %683 = vmatpush1.xpose.msra.mxu0 0.0
        %684 = vmatprep.subr.mxu0 0.0
        %685 = vmatpush1.xpose.msra.mxu0 0.0
        %686 = vmatprep.subr.mxu0 0.0
        %687 = vmatpush1.xpose.msra.mxu0 0.0
        %688 = vmatprep.subr.mxu0 0.0
        %689 = vmatpush1.xpose.msra.mxu0 0.0
        %690 = vmatprep.subr.mxu0 0.0
        %691 = vmatpush1.xpose.msra.mxu0 0.0
        %692 = vmatprep.subr.mxu0 0.0
        %693 = vmatpush1.xpose.msra.mxu0 0.0
        %694 = vmatprep.subr.mxu0 0.0
        %695 = vmatpush1.xpose.msra.mxu0 0.0
        %696 = vmatprep.subr.mxu0 0.0
        %697 = vmatpush1.xpose.msra.mxu0 0.0
        %698 = vmatprep.subr.mxu0 0.0
        %699 = vmatpush1.xpose.msra.mxu0 0.0
        %700 = vmatprep.subr.mxu0 0.0
        %701 = vmatpush1.xpose.msra.mxu0 0.0
        %702 = vmatprep.subr.mxu0 0.0
        %703 = vmatpush1.xpose.msra.mxu0 0.0
        %704 = vmatprep.subr.mxu0 0.0
        %705 = vmatpush1.xpose.msra.mxu0 0.0
        %v706 = vand.u32 %v164, 4294901760
        %707 = vmatprep.mubr.f32.mxu0 %v706
        %v708 = vand.u32 %v163, 4294901760
        %709 = vmatmul.mubr.f32.gmra.mrb[0].mxu0 %v708
        %v710 = vpop.f32.mrb[0].mxu0
        %v711 = vadd.f32 %v628, %v710
        %v712 = vpop.f32.mrb[0].mxu0
        %v713 = vand.u32 %v166, 4294901760
        %714 = vmatprep.mubr.f32.mxu0 %v713
        %v715 = vand.u32 %v165, 4294901760
        %716 = vmatmul.mubr.f32.gmra.mrb[0].mxu0 %v715
        %v717 = vpop.f32.mrb[0].mxu0
        %v718 = vadd.f32 %v635, %v717
        %v719 = vpop.f32.mrb[0].mxu0
        %720 = vdwg.mxu0
        %vm721 = vcmask 130048
        %v722 = vsel %vm721, %v711, inf
        %723 = vmin.xlane.f32.xlu0 %v722
        %v724 = vpop.xlane.xlu0 %723
        %v725 = vsel %vm721, %v718, inf
        %726 = vmin.xlane.f32.xlu0 %v725
        %v727 = vpop.xlane.xlu0 %726
        %v728 = vsub.f32 %v724, %v711
        %v729 = vsub.f32 %v727, %v718
        %v730 = vmul.f32 %v728, 1.442695
        %v731 = vpow.pop %v730
        %v732 = vmul.f32 %v729, 1.442695
        %v733 = vpow.pop %v732
        %v734 = vsel %vm721, %v731, 0.0
        %735 = vadd.xlane.f32.xlu0 %v734
        %v736 = vpop.xlane.xlu0 %735
        %v737 = vsel %vm721, %v733, 0.0
        %738 = vadd.xlane.f32.xlu0 %v737
        %v739 = vpop.xlane.xlu0 %738
        %v740 = vrcp.pop %v736
        %v741 = vmul.f32 %v731, %v740
        %v742 = vrcp.pop %v739
        %v743 = vmul.f32 %v733, %v742
        %v745 = vsel %vm721, %v741, 0
        %v748 = vsel %vm721, %v743, 0
        %v750 = vand.u32 %v164, 4294901760
        %751 = vmatprep.subr.mxu0 %v750
        %v752 = vand.u32 %v163, 4294901760
        %753 = vmatpush1.msra.mxu0 %v752
        %v754 = vand.u32 %v166, 4294901760
        %755 = vmatprep.subr.mxu0 %v754
        %v756 = vand.u32 %v165, 4294901760
        %757 = vmatpush1.msra.mxu0 %v756
        %758 = vmatprep.subr.mxu0 0.0
        %759 = vmatpush1.msra.mxu0 0.0
        %760 = vmatprep.subr.mxu0 0.0
        %761 = vmatpush1.msra.mxu0 0.0
        %762 = vmatprep.subr.mxu0 0.0
        %763 = vmatpush1.msra.mxu0 0.0
        %764 = vmatprep.subr.mxu0 0.0
        %765 = vmatpush1.msra.mxu0 0.0
        %766 = vmatprep.subr.mxu0 0.0
        %767 = vmatpush1.msra.mxu0 0.0
        %768 = vmatprep.subr.mxu0 0.0
        %769 = vmatpush1.msra.mxu0 0.0
        %770 = vmatprep.subr.mxu0 0.0
        %771 = vmatpush1.msra.mxu0 0.0
        %772 = vmatprep.subr.mxu0 0.0
        %773 = vmatpush1.msra.mxu0 0.0
        %774 = vmatprep.subr.mxu0 0.0
        %775 = vmatpush1.msra.mxu0 0.0
        %776 = vmatprep.subr.mxu0 0.0
        %777 = vmatpush1.msra.mxu0 0.0
        %778 = vmatprep.subr.mxu0 0.0
        %779 = vmatpush1.msra.mxu0 0.0
        %780 = vmatprep.subr.mxu0 0.0
        %781 = vmatpush1.msra.mxu0 0.0
        %782 = vmatprep.subr.mxu0 0.0
        %783 = vmatpush1.msra.mxu0 0.0
        %784 = vmatprep.subr.mxu0 0.0
        %785 = vmatpush1.msra.mxu0 0.0
        %786 = vmatprep.subr.mxu0 0.0
        %787 = vmatpush1.msra.mxu0 0.0
        %788 = vmatprep.subr.mxu0 0.0
        %789 = vmatpush1.msra.mxu0 0.0
        %790 = vmatprep.subr.mxu0 0.0
        %791 = vmatpush1.msra.mxu0 0.0
        %792 = vmatprep.subr.mxu0 0.0
        %793 = vmatpush1.msra.mxu0 0.0
        %794 = vmatprep.subr.mxu0 0.0
        %795 = vmatpush1.msra.mxu0 0.0
        %796 = vmatprep.subr.mxu0 0.0
        %797 = vmatpush1.msra.mxu0 0.0
        %798 = vmatprep.subr.mxu0 0.0
        %799 = vmatpush1.msra.mxu0 0.0
        %800 = vmatprep.subr.mxu0 0.0
        %801 = vmatpush1.msra.mxu0 0.0
        %802 = vmatprep.subr.mxu0 0.0
        %803 = vmatpush1.msra.mxu0 0.0
        %804 = vmatprep.subr.mxu0 0.0
        %805 = vmatpush1.msra.mxu0 0.0
        %806 = vmatprep.subr.mxu0 0.0
        %807 = vmatpush1.msra.mxu0 0.0
        %808 = vmatprep.subr.mxu0 0.0
        %809 = vmatpush1.msra.mxu0 0.0
        %810 = vmatprep.subr.mxu0 0.0
        %811 = vmatpush1.msra.mxu0 0.0
        %812 = vmatprep.subr.mxu0 0.0
        %813 = vmatpush1.msra.mxu0 0.0
        %814 = vmatprep.subr.mxu0 0.0
        %815 = vmatpush1.msra.mxu0 0.0
        %816 = vmatprep.subr.mxu0 0.0
        %817 = vmatpush1.msra.mxu0 0.0
        %818 = vmatprep.mubr.f32.mxu0 0.0
        %v819 = vand.u32 %v745, 4294901760
        %v820 = vsub.f32 %v745, %v819
        %v821 = vand.u32 %v820, 4294901760
        %v822 = vsub.f32 %v820, %v821
        %v823 = vand.u32 %v822, 4294901760
        %824 = vmatmul.mubr.f32.gmra.mrb[0].mxu0 %v823
        %v825 = vpop.f32.mrb[0].mxu0
        %v826 = vadd.f32 0.0, %v825
        %v827 = vpop.f32.mrb[0].mxu0
        %v828 = vadd.f32 0.0, %v827
        %829 = vmatprep.mubr.f32.mxu0 0.0
        %v830 = vand.u32 %v748, 4294901760
        %v831 = vsub.f32 %v748, %v830
        %v832 = vand.u32 %v831, 4294901760
        %v833 = vsub.f32 %v831, %v832
        %v834 = vand.u32 %v833, 4294901760
        %835 = vmatmul.mubr.f32.gmra.mrb[0].mxu0 %v834
        %v836 = vpop.f32.mrb[0].mxu0
        %v837 = vadd.f32 0.0, %v836
        %v838 = vpop.f32.mrb[0].mxu0
        %v839 = vadd.f32 0.0, %v838
        %840 = vdwg.mxu0
        %v841 = vand.u32 %v164, 4294901760
        %v842 = vsub.f32 %v164, %v841
        %v843 = vand.u32 %v842, 4294901760
        %v844 = vsub.f32 %v842, %v843
        %v845 = vand.u32 %v844, 4294901760
        %846 = vmatprep.subr.mxu0 %v845
        %v847 = vand.u32 %v163, 4294901760
        %v848 = vsub.f32 %v163, %v847
        %v849 = vand.u32 %v848, 4294901760
        %v850 = vsub.f32 %v848, %v849
        %v851 = vand.u32 %v850, 4294901760
        %852 = vmatpush1.msra.mxu0 %v851
        %v853 = vand.u32 %v166, 4294901760
        %v854 = vsub.f32 %v166, %v853
        %v855 = vand.u32 %v854, 4294901760
        %v856 = vsub.f32 %v854, %v855
        %v857 = vand.u32 %v856, 4294901760
        %858 = vmatprep.subr.mxu0 %v857
        %v859 = vand.u32 %v165, 4294901760
        %v860 = vsub.f32 %v165, %v859
        %v861 = vand.u32 %v860, 4294901760
        %v862 = vsub.f32 %v860, %v861
        %v863 = vand.u32 %v862, 4294901760
        %864 = vmatpush1.msra.mxu0 %v863
        %865 = vmatprep.subr.mxu0 0.0
        %866 = vmatpush1.msra.mxu0 0.0
        %867 = vmatprep.subr.mxu0 0.0
        %868 = vmatpush1.msra.mxu0 0.0
        %869 = vmatprep.subr.mxu0 0.0
        %870 = vmatpush1.msra.mxu0 0.0
        %871 = vmatprep.subr.mxu0 0.0
        %872 = vmatpush1.msra.mxu0 0.0
        %873 = vmatprep.subr.mxu0 0.0
        %874 = vmatpush1.msra.mxu0 0.0
        %875 = vmatprep.subr.mxu0 0.0
        %876 = vmatpush1.msra.mxu0 0.0
        %877 = vmatprep.subr.mxu0 0.0
        %878 = vmatpush1.msra.mxu0 0.0
        %879 = vmatprep.subr.mxu0 0.0
        %880 = vmatpush1.msra.mxu0 0.0
        %881 = vmatprep.subr.mxu0 0.0
        %882 = vmatpush1.msra.mxu0 0.0
        %883 = vmatprep.subr.mxu0 0.0
        %884 = vmatpush1.msra.mxu0 0.0
        %885 = vmatprep.subr.mxu0 0.0
        %886 = vmatpush1.msra.mxu0 0.0
        %887 = vmatprep.subr.mxu0 0.0
        %888 = vmatpush1.msra.mxu0 0.0
        %889 = vmatprep.subr.mxu0 0.0
        %890 = vmatpush1.msra.mxu0 0.0
        %891 = vmatprep.subr.mxu0 0.0
        %892 = vmatpush1.msra.mxu0 0.0
        %893 = vmatprep.subr.mxu0 0.0
        %894 = vmatpush1.msra.mxu0 0.0
        %895 = vmatprep.subr.mxu0 0.0
        %896 = vmatpush1.msra.mxu0 0.0
        %897 = vmatprep.subr.mxu0 0.0
        %898 = vmatpush1.msra.mxu0 0.0
        %899 = vmatprep.subr.mxu0 0.0
        %900 = vmatpush1.msra.mxu0 0.0
        %901 = vmatprep.subr.mxu0 0.0
        %902 = vmatpush1.msra.mxu0 0.0
        %903 = vmatprep.subr.mxu0 0.0
        %904 = vmatpush1.msra.mxu0 0.0
        %905 = vmatprep.subr.mxu0 0.0
        %906 = vmatpush1.msra.mxu0 0.0
        %907 = vmatprep.subr.mxu0 0.0
        %908 = vmatpush1.msra.mxu0 0.0
        %909 = vmatprep.subr.mxu0 0.0
        %910 = vmatpush1.msra.mxu0 0.0
        %911 = vmatprep.subr.mxu0 0.0
        %912 = vmatpush1.msra.mxu0 0.0
        %913 = vmatprep.subr.mxu0 0.0
        %914 = vmatpush1.msra.mxu0 0.0
        %915 = vmatprep.subr.mxu0 0.0
        %916 = vmatpush1.msra.mxu0 0.0
        %917 = vmatprep.subr.mxu0 0.0
        %918 = vmatpush1.msra.mxu0 0.0
        %919 = vmatprep.subr.mxu0 0.0
        %920 = vmatpush1.msra.mxu0 0.0
        %921 = vmatprep.subr.mxu0 0.0
        %922 = vmatpush1.msra.mxu0 0.0
        %923 = vmatprep.subr.mxu0 0.0
        %924 = vmatpush1.msra.mxu0 0.0
        %925 = vmatprep.mubr.f32.mxu0 0.0
        %v926 = vand.u32 %v745, 4294901760
        %927 = vmatmul.mubr.f32.gmra.mrb[0].mxu0 %v926
        %v928 = vpop.f32.mrb[0].mxu0
        %v929 = vadd.f32 %v826, %v928
        %v930 = vpop.f32.mrb[0].mxu0
        %v931 = vadd.f32 %v828, %v930
        %932 = vmatprep.mubr.f32.mxu0 0.0
        %v933 = vand.u32 %v748, 4294901760
        %934 = vmatmul.mubr.f32.gmra.mrb[0].mxu0 %v933
        %v935 = vpop.f32.mrb[0].mxu0
        %v936 = vadd.f32 %v837, %v935
        %v937 = vpop.f32.mrb[0].mxu0
        %v938 = vadd.f32 %v839, %v937
        %939 = vdwg.mxu0
        %v940 = vand.u32 %v164, 4294901760
        %v941 = vsub.f32 %v164, %v940
        %942 = vmatprep.subr.mxu0 %v941
        %v943 = vand.u32 %v163, 4294901760
        %v944 = vsub.f32 %v163, %v943
        %945 = vmatpush1.msra.mxu0 %v944
        %v946 = vand.u32 %v166, 4294901760
        %v947 = vsub.f32 %v166, %v946
        %948 = vmatprep.subr.mxu0 %v947
        %v949 = vand.u32 %v165, 4294901760
        %v950 = vsub.f32 %v165, %v949
        %951 = vmatpush1.msra.mxu0 %v950
        %952 = vmatprep.subr.mxu0 0.0
        %953 = vmatpush1.msra.mxu0 0.0
        %954 = vmatprep.subr.mxu0 0.0
        %955 = vmatpush1.msra.mxu0 0.0
        %956 = vmatprep.subr.mxu0 0.0
        %957 = vmatpush1.msra.mxu0 0.0
        %958 = vmatprep.subr.mxu0 0.0
        %959 = vmatpush1.msra.mxu0 0.0
        %960 = vmatprep.subr.mxu0 0.0
        %961 = vmatpush1.msra.mxu0 0.0
        %962 = vmatprep.subr.mxu0 0.0
        %963 = vmatpush1.msra.mxu0 0.0
        %964 = vmatprep.subr.mxu0 0.0
        %965 = vmatpush1.msra.mxu0 0.0
        %966 = vmatprep.subr.mxu0 0.0
        %967 = vmatpush1.msra.mxu0 0.0
        %968 = vmatprep.subr.mxu0 0.0
        %969 = vmatpush1.msra.mxu0 0.0
        %970 = vmatprep.subr.mxu0 0.0
        %971 = vmatpush1.msra.mxu0 0.0
        %972 = vmatprep.subr.mxu0 0.0
        %973 = vmatpush1.msra.mxu0 0.0
        %974 = vmatprep.subr.mxu0 0.0
        %975 = vmatpush1.msra.mxu0 0.0
        %976 = vmatprep.subr.mxu0 0.0
        %977 = vmatpush1.msra.mxu0 0.0
        %978 = vmatprep.subr.mxu0 0.0
        %979 = vmatpush1.msra.mxu0 0.0
        %980 = vmatprep.subr.mxu0 0.0
        %981 = vmatpush1.msra.mxu0 0.0
        %982 = vmatprep.subr.mxu0 0.0
        %983 = vmatpush1.msra.mxu0 0.0
        %984 = vmatprep.subr.mxu0 0.0
        %985 = vmatpush1.msra.mxu0 0.0
        %986 = vmatprep.subr.mxu0 0.0
        %987 = vmatpush1.msra.mxu0 0.0
        %988 = vmatprep.subr.mxu0 0.0
        %989 = vmatpush1.msra.mxu0 0.0
        %990 = vmatprep.subr.mxu0 0.0
        %991 = vmatpush1.msra.mxu0 0.0
        %992 = vmatprep.subr.mxu0 0.0
        %993 = vmatpush1.msra.mxu0 0.0
        %994 = vmatprep.subr.mxu0 0.0
        %995 = vmatpush1.msra.mxu0 0.0
        %996 = vmatprep.subr.mxu0 0.0
        %997 = vmatpush1.msra.mxu0 0.0
        %998 = vmatprep.subr.mxu0 0.0
        %999 = vmatpush1.msra.mxu0 0.0
        %1000 = vmatprep.subr.mxu0 0.0
        %1001 = vmatpush1.msra.mxu0 0.0
        %1002 = vmatprep.subr.mxu0 0.0
        %1003 = vmatpush1.msra.mxu0 0.0
        %1004 = vmatprep.subr.mxu0 0.0
        %1005 = vmatpush1.msra.mxu0 0.0
        %1006 = vmatprep.subr.mxu0 0.0
        %1007 = vmatpush1.msra.mxu0 0.0
        %1008 = vmatprep.subr.mxu0 0.0
        %1009 = vmatpush1.msra.mxu0 0.0
        %1010 = vmatprep.subr.mxu0 0.0
        %1011 = vmatpush1.msra.mxu0 0.0
        %1012 = vmatprep.mubr.f32.mxu0 0.0
        %v1013 = vand.u32 %v745, 4294901760
        %v1014 = vsub.f32 %v745, %v1013
        %1015 = vmatmul.mubr.f32.gmra.mrb[0].mxu0 %v1014
        %v1016 = vpop.f32.mrb[0].mxu0
        %v1017 = vadd.f32 %v929, %v1016
        %v1018 = vpop.f32.mrb[0].mxu0
        %v1019 = vadd.f32 %v931, %v1018
        %1020 = vmatprep.mubr.f32.mxu0 0.0
        %v1021 = vand.u32 %v748, 4294901760
        %v1022 = vsub.f32 %v748, %v1021
        %1023 = vmatmul.mubr.f32.gmra.mrb[0].mxu0 %v1022
        %v1024 = vpop.f32.mrb[0].mxu0
        %v1025 = vadd.f32 %v936, %v1024
        %v1026 = vpop.f32.mrb[0].mxu0
        %v1027 = vadd.f32 %v938, %v1026
        %1028 = vdwg.mxu0
        %v1029 = vand.u32 %v164, 4294901760
        %1030 = vmatprep.subr.mxu0 %v1029
        %v1031 = vand.u32 %v163, 4294901760
        %1032 = vmatpush1.msra.mxu0 %v1031
        %v1033 = vand.u32 %v166, 4294901760
        %1034 = vmatprep.subr.mxu0 %v1033
        %v1035 = vand.u32 %v165, 4294901760
        %1036 = vmatpush1.msra.mxu0 %v1035
        %1037 = vmatprep.subr.mxu0 0.0
        %1038 = vmatpush1.msra.mxu0 0.0
        %1039 = vmatprep.subr.mxu0 0.0
        %1040 = vmatpush1.msra.mxu0 0.0
        %1041 = vmatprep.subr.mxu0 0.0
        %1042 = vmatpush1.msra.mxu0 0.0
        %1043 = vmatprep.subr.mxu0 0.0
        %1044 = vmatpush1.msra.mxu0 0.0
        %1045 = vmatprep.subr.mxu0 0.0
        %1046 = vmatpush1.msra.mxu0 0.0
        %1047 = vmatprep.subr.mxu0 0.0
        %1048 = vmatpush1.msra.mxu0 0.0
        %1049 = vmatprep.subr.mxu0 0.0
        %1050 = vmatpush1.msra.mxu0 0.0
        %1051 = vmatprep.subr.mxu0 0.0
        %1052 = vmatpush1.msra.mxu0 0.0
        %1053 = vmatprep.subr.mxu0 0.0
        %1054 = vmatpush1.msra.mxu0 0.0
        %1055 = vmatprep.subr.mxu0 0.0
        %1056 = vmatpush1.msra.mxu0 0.0
        %1057 = vmatprep.subr.mxu0 0.0
        %1058 = vmatpush1.msra.mxu0 0.0
        %1059 = vmatprep.subr.mxu0 0.0
        %1060 = vmatpush1.msra.mxu0 0.0
        %1061 = vmatprep.subr.mxu0 0.0
        %1062 = vmatpush1.msra.mxu0 0.0
        %1063 = vmatprep.subr.mxu0 0.0
        %1064 = vmatpush1.msra.mxu0 0.0
        %1065 = vmatprep.subr.mxu0 0.0
        %1066 = vmatpush1.msra.mxu0 0.0
        %1067 = vmatprep.subr.mxu0 0.0
        %1068 = vmatpush1.msra.mxu0 0.0
        %1069 = vmatprep.subr.mxu0 0.0
        %1070 = vmatpush1.msra.mxu0 0.0
        %1071 = vmatprep.subr.mxu0 0.0
        %1072 = vmatpush1.msra.mxu0 0.0
        %1073 = vmatprep.subr.mxu0 0.0
        %1074 = vmatpush1.msra.mxu0 0.0
        %1075 = vmatprep.subr.mxu0 0.0
        %1076 = vmatpush1.msra.mxu0 0.0
        %1077 = vmatprep.subr.mxu0 0.0
        %1078 = vmatpush1.msra.mxu0 0.0
        %1079 = vmatprep.subr.mxu0 0.0
        %1080 = vmatpush1.msra.mxu0 0.0
        %1081 = vmatprep.subr.mxu0 0.0
        %1082 = vmatpush1.msra.mxu0 0.0
        %1083 = vmatprep.subr.mxu0 0.0
        %1084 = vmatpush1.msra.mxu0 0.0
        %1085 = vmatprep.subr.mxu0 0.0
        %1086 = vmatpush1.msra.mxu0 0.0
        %1087 = vmatprep.subr.mxu0 0.0
        %1088 = vmatpush1.msra.mxu0 0.0
        %1089 = vmatprep.subr.mxu0 0.0
        %1090 = vmatpush1.msra.mxu0 0.0
        %1091 = vmatprep.subr.mxu0 0.0
        %1092 = vmatpush1.msra.mxu0 0.0
        %1093 = vmatprep.subr.mxu0 0.0
        %1094 = vmatpush1.msra.mxu0 0.0
        %1095 = vmatprep.subr.mxu0 0.0
        %1096 = vmatpush1.msra.mxu0 0.0
        %1097 = vmatprep.mubr.f32.mxu0 0.0
        %v1098 = vand.u32 %v745, 4294901760
        %v1099 = vsub.f32 %v745, %v1098
        %v1100 = vand.u32 %v1099, 4294901760
        %1101 = vmatmul.mubr.f32.gmra.mrb[0].mxu0 %v1100
        %v1102 = vpop.f32.mrb[0].mxu0
        %v1103 = vadd.f32 %v1017, %v1102
        %v1104 = vpop.f32.mrb[0].mxu0
        %v1105 = vadd.f32 %v1019, %v1104
        %1106 = vmatprep.mubr.f32.mxu0 0.0
        %v1107 = vand.u32 %v748, 4294901760
        %v1108 = vsub.f32 %v748, %v1107
        %v1109 = vand.u32 %v1108, 4294901760
        %1110 = vmatmul.mubr.f32.gmra.mrb[0].mxu0 %v1109
        %v1111 = vpop.f32.mrb[0].mxu0
        %v1112 = vadd.f32 %v1025, %v1111
        %v1113 = vpop.f32.mrb[0].mxu0
        %v1114 = vadd.f32 %v1027, %v1113
        %1115 = vdwg.mxu0
        %v1116 = vand.u32 %v164, 4294901760
        %v1117 = vsub.f32 %v164, %v1116
        %v1118 = vand.u32 %v1117, 4294901760
        %1119 = vmatprep.subr.mxu0 %v1118
        %v1120 = vand.u32 %v163, 4294901760
        %v1121 = vsub.f32 %v163, %v1120
        %v1122 = vand.u32 %v1121, 4294901760
        %1123 = vmatpush1.msra.mxu0 %v1122
        %v1124 = vand.u32 %v166, 4294901760
        %v1125 = vsub.f32 %v166, %v1124
        %v1126 = vand.u32 %v1125, 4294901760
        %1127 = vmatprep.subr.mxu0 %v1126
        %v1128 = vand.u32 %v165, 4294901760
        %v1129 = vsub.f32 %v165, %v1128
        %v1130 = vand.u32 %v1129, 4294901760
        %1131 = vmatpush1.msra.mxu0 %v1130
        %1132 = vmatprep.subr.mxu0 0.0
        %1133 = vmatpush1.msra.mxu0 0.0
        %1134 = vmatprep.subr.mxu0 0.0
        %1135 = vmatpush1.msra.mxu0 0.0
        %1136 = vmatprep.subr.mxu0 0.0
        %1137 = vmatpush1.msra.mxu0 0.0
        %1138 = vmatprep.subr.mxu0 0.0
        %1139 = vmatpush1.msra.mxu0 0.0
        %1140 = vmatprep.subr.mxu0 0.0
        %1141 = vmatpush1.msra.mxu0 0.0
        %1142 = vmatprep.subr.mxu0 0.0
        %1143 = vmatpush1.msra.mxu0 0.0
        %1144 = vmatprep.subr.mxu0 0.0
        %1145 = vmatpush1.msra.mxu0 0.0
        %1146 = vmatprep.subr.mxu0 0.0
        %1147 = vmatpush1.msra.mxu0 0.0
        %1148 = vmatprep.subr.mxu0 0.0
        %1149 = vmatpush1.msra.mxu0 0.0
        %1150 = vmatprep.subr.mxu0 0.0
        %1151 = vmatpush1.msra.mxu0 0.0
        %1152 = vmatprep.subr.mxu0 0.0
        %1153 = vmatpush1.msra.mxu0 0.0
        %1154 = vmatprep.subr.mxu0 0.0
        %1155 = vmatpush1.msra.mxu0 0.0
        %1156 = vmatprep.subr.mxu0 0.0
        %1157 = vmatpush1.msra.mxu0 0.0
        %1158 = vmatprep.subr.mxu0 0.0
        %1159 = vmatpush1.msra.mxu0 0.0
        %1160 = vmatprep.subr.mxu0 0.0
        %1161 = vmatpush1.msra.mxu0 0.0
        %1162 = vmatprep.subr.mxu0 0.0
        %1163 = vmatpush1.msra.mxu0 0.0
        %1164 = vmatprep.subr.mxu0 0.0
        %1165 = vmatpush1.msra.mxu0 0.0
        %1166 = vmatprep.subr.mxu0 0.0
        %1167 = vmatpush1.msra.mxu0 0.0
        %1168 = vmatprep.subr.mxu0 0.0
        %1169 = vmatpush1.msra.mxu0 0.0
        %1170 = vmatprep.subr.mxu0 0.0
        %1171 = vmatpush1.msra.mxu0 0.0
        %1172 = vmatprep.subr.mxu0 0.0
        %1173 = vmatpush1.msra.mxu0 0.0
        %1174 = vmatprep.subr.mxu0 0.0
        %1175 = vmatpush1.msra.mxu0 0.0
        %1176 = vmatprep.subr.mxu0 0.0
        %1177 = vmatpush1.msra.mxu0 0.0
        %1178 = vmatprep.subr.mxu0 0.0
        %1179 = vmatpush1.msra.mxu0 0.0
        %1180 = vmatprep.subr.mxu0 0.0
        %1181 = vmatpush1.msra.mxu0 0.0
        %1182 = vmatprep.subr.mxu0 0.0
        %1183 = vmatpush1.msra.mxu0 0.0
        %1184 = vmatprep.subr.mxu0 0.0
        %1185 = vmatpush1.msra.mxu0 0.0
        %1186 = vmatprep.subr.mxu0 0.0
        %1187 = vmatpush1.msra.mxu0 0.0
        %1188 = vmatprep.subr.mxu0 0.0
        %1189 = vmatpush1.msra.mxu0 0.0
        %1190 = vmatprep.subr.mxu0 0.0
        %1191 = vmatpush1.msra.mxu0 0.0
        %1192 = vmatprep.mubr.f32.mxu0 0.0
        %v1193 = vand.u32 %v745, 4294901760
        %1194 = vmatmul.mubr.f32.gmra.mrb[0].mxu0 %v1193
        %v1195 = vpop.f32.mrb[0].mxu0
        %v1196 = vadd.f32 %v1103, %v1195
        %v1197 = vpop.f32.mrb[0].mxu0
        %v1198 = vadd.f32 %v1105, %v1197
        %1199 = vmatprep.mubr.f32.mxu0 0.0
        %v1200 = vand.u32 %v748, 4294901760
        %1201 = vmatmul.mubr.f32.gmra.mrb[0].mxu0 %v1200
        %v1202 = vpop.f32.mrb[0].mxu0
        %v1203 = vadd.f32 %v1112, %v1202
        %v1204 = vpop.f32.mrb[0].mxu0
        %v1205 = vadd.f32 %v1114, %v1204
        %1206 = vdwg.mxu0
        %v1207 = vand.u32 %v164, 4294901760
        %1208 = vmatprep.subr.mxu0 %v1207
        %v1209 = vand.u32 %v163, 4294901760
        %1210 = vmatpush1.msra.mxu0 %v1209
        %v1211 = vand.u32 %v166, 4294901760
        %1212 = vmatprep.subr.mxu0 %v1211
        %v1213 = vand.u32 %v165, 4294901760
        %1214 = vmatpush1.msra.mxu0 %v1213
        %1215 = vmatprep.subr.mxu0 0.0
        %1216 = vmatpush1.msra.mxu0 0.0
        %1217 = vmatprep.subr.mxu0 0.0
        %1218 = vmatpush1.msra.mxu0 0.0
        %1219 = vmatprep.subr.mxu0 0.0
        %1220 = vmatpush1.msra.mxu0 0.0
        %1221 = vmatprep.subr.mxu0 0.0
        %1222 = vmatpush1.msra.mxu0 0.0
        %1223 = vmatprep.subr.mxu0 0.0
        %1224 = vmatpush1.msra.mxu0 0.0
        %1225 = vmatprep.subr.mxu0 0.0
        %1226 = vmatpush1.msra.mxu0 0.0
        %1227 = vmatprep.subr.mxu0 0.0
        %1228 = vmatpush1.msra.mxu0 0.0
        %1229 = vmatprep.subr.mxu0 0.0
        %1230 = vmatpush1.msra.mxu0 0.0
        %1231 = vmatprep.subr.mxu0 0.0
        %1232 = vmatpush1.msra.mxu0 0.0
        %1233 = vmatprep.subr.mxu0 0.0
        %1234 = vmatpush1.msra.mxu0 0.0
        %1235 = vmatprep.subr.mxu0 0.0
        %1236 = vmatpush1.msra.mxu0 0.0
        %1237 = vmatprep.subr.mxu0 0.0
        %1238 = vmatpush1.msra.mxu0 0.0
        %1239 = vmatprep.subr.mxu0 0.0
        %1240 = vmatpush1.msra.mxu0 0.0
        %1241 = vmatprep.subr.mxu0 0.0
        %1242 = vmatpush1.msra.mxu0 0.0
        %1243 = vmatprep.subr.mxu0 0.0
        %1244 = vmatpush1.msra.mxu0 0.0
        %1245 = vmatprep.subr.mxu0 0.0
        %1246 = vmatpush1.msra.mxu0 0.0
        %1247 = vmatprep.subr.mxu0 0.0
        %1248 = vmatpush1.msra.mxu0 0.0
        %1249 = vmatprep.subr.mxu0 0.0
        %1250 = vmatpush1.msra.mxu0 0.0
        %1251 = vmatprep.subr.mxu0 0.0
        %1252 = vmatpush1.msra.mxu0 0.0
        %1253 = vmatprep.subr.mxu0 0.0
        %1254 = vmatpush1.msra.mxu0 0.0
        %1255 = vmatprep.subr.mxu0 0.0
        %1256 = vmatpush1.msra.mxu0 0.0
        %1257 = vmatprep.subr.mxu0 0.0
        %1258 = vmatpush1.msra.mxu0 0.0
        %1259 = vmatprep.subr.mxu0 0.0
        %1260 = vmatpush1.msra.mxu0 0.0
        %1261 = vmatprep.subr.mxu0 0.0
        %1262 = vmatpush1.msra.mxu0 0.0
        %1263 = vmatprep.subr.mxu0 0.0
        %1264 = vmatpush1.msra.mxu0 0.0
        %1265 = vmatprep.subr.mxu0 0.0
        %1266 = vmatpush1.msra.mxu0 0.0
        %1267 = vmatprep.subr.mxu0 0.0
        %1268 = vmatpush1.msra.mxu0 0.0
        %1269 = vmatprep.subr.mxu0 0.0
        %1270 = vmatpush1.msra.mxu0 0.0
        %1271 = vmatprep.subr.mxu0 0.0
        %1272 = vmatpush1.msra.mxu0 0.0
        %1273 = vmatprep.subr.mxu0 0.0
        %1274 = vmatpush1.msra.mxu0 0.0
        %1275 = vmatprep.mubr.f32.mxu0 0.0
        %v1276 = vand.u32 %v745, 4294901760
        %1277 = vmatmul.mubr.f32.gmra.mrb[0].mxu0 %v1276
        %v1278 = vpop.f32.mrb[0].mxu0
        %v1279 = vadd.f32 %v1196, %v1278
        %v1280 = vpop.f32.mrb[0].mxu0
        %v1281 = vadd.f32 %v1198, %v1280
        %1282 = vmatprep.mubr.f32.mxu0 0.0
        %v1283 = vand.u32 %v748, 4294901760
        %1284 = vmatmul.mubr.f32.gmra.mrb[0].mxu0 %v1283
        %v1285 = vpop.f32.mrb[0].mxu0
        %v1286 = vadd.f32 %v1203, %v1285
        %v1287 = vpop.f32.mrb[0].mxu0
        %v1288 = vadd.f32 %v1205, %v1287
        %1289 = vdwg.mxu0
        %s1290 = sld [smem:[#allocation2]]
        %v1291 = vstv %s1290
        %v1292 = vmul.f32 %v1291, %v1279
        %v1293 = vmul.f32 %v1291, %v1281
        %v1294 = vmul.f32 %v1291, %v1286
        %v1295 = vmul.f32 %v1291, %v1288
        %v1296 = vadd.f32 %v1292, %v163
        %v1297 = vadd.f32 %v1293, %v164
        %v1298 = vadd.f32 %v1294, %v165
        %v1299 = vadd.f32 %v1295, %v166
        %1300 = vst [vmem:[%s162] sm:$0xff] %v1296
        %1301 = vst [vmem:[%s162 + $0x8] sm:$0xff] %v1297
        %1302 = vst [vmem:[%s162 + $0x10] sm:$0xff] %v1298
        %1303 = vst [vmem:[%s162 + $0x18] sm:$0xff] %v1299
        %s1304 = sand.u32 %s75, 1
        %s1305 = scalar_lea.sflag [#allocation5], %s1304
        %s1306 = sand.u32 %s75, 1
        %s1307 = smul.addr %s1306, 32
        %s1308 = scalar_lea.vmem [#allocation6], %s1307
        // Predicated region
        $region33: #{tpu_custom_call.1} parent=27 // pred_check
          %p1309 = pneg %p85
        $region34: #{tpu_custom_call.1} parent=27 // pred_check_branch
          %1311 = sbr.rel (%p1309) target = $region36
        $region35: #{tpu_custom_call.1} parent=27 // pred_region
          %s1313 = ssub.s32 512, 512
          %1314 = vsyncadd %s1305, %s1313
          %s1315 = smul.addr %s20, 4
          %s1316 = smul.addr %s1315, 128
          %s1317 = scalar_lea.hbm %s2, %s1316
          %s1318 = sshll.u32 %s1308, 4
          %s1319 = int_to_ptr.vmem [resolvable:$true] %s1318
          %1324 = dma.vmem_to_hbm [thread:$0]  %s1319, 512, %s1317, %s1305, 256, 256, 16
        $region36: #{tpu_custom_call.1} parent=27 // pred_fallthru
          _
      $region28: #{tpu_custom_call.1} parent=5 // pred_fallthru
        _
      %p1325 = scmp.le.s32.totalorder 2, %s15
      // Predicated region
      $region37: #{tpu_custom_call.1} parent=5 // pred_check
        %p1326 = pneg %p1325
      $region38: #{tpu_custom_call.1} parent=5 // pred_check_branch
        %1328 = sbr.rel (%p1326) target = $region40
      $region39: #{tpu_custom_call.1} parent=5 // pred_region
        %s1329 = ssub.s32 %s15, 2
        // Predicated region
        $region41: #{tpu_custom_call.1} parent=39 // pred_check
          %p1330 = pneg %p91
        $region42: #{tpu_custom_call.1} parent=39 // pred_check_branch
          %1332 = sbr.rel (%p1330) target = $region44
        $region43: #{tpu_custom_call.1} parent=39 // pred_region
          %s1333 = sand.u32 %s76, 1
          %s1334 = scalar_lea.sflag [#allocation5], %s1333
          %s1335 = sand.u32 %s76, 1
          %s1336 = smul.addr %s1335, 32
          %s1337 = scalar_lea.vmem [#allocation6], %s1336
          %1338 = dma.done %s1334, 512
        $region44: #{tpu_custom_call.1} parent=39 // pred_fallthru
          _
      $region40: #{tpu_custom_call.1} parent=5 // pred_fallthru
        _
    $region6: #{tpu_custom_call.1} parent=1 // loop_footer
      %s19 = sadd.s32 1, %s15
    $region7: #{tpu_custom_call.1} parent=1 // loop_footer_branch
      %14 = sbr.rel target = $region3
    $region8: #{tpu_custom_call.1} parent=1 // loop_exit
      _
    %1339 = vsyncpa [#allocation4], 1
    %s1340 = scalar_lea.sflag [#allocation4], 1
    %1341 = vsyncpa %s1340, 1
    %1342 = vsyncpa [#allocation5], 1
    %s1343 = scalar_lea.sflag [#allocation5], 1
    %1344 = vsyncpa %s1343, 1

</llo_original>
